<compile_context>
chip_gen: v7x
topology: tpu7x:2x2x1
jax: 0.10.0
libtpu: 0.0.40
codegen_flags: <defaults>
</compile_context>

<pallas_src>
import functools

import jax
import jax.numpy as jnp
from jax.experimental import pallas as pl
from jax.experimental.pallas import tpu as pltpu


def _block_mask_kernel(padmask_ref, smask_ref, *, block_size, H, W):
    """Compute scale * (1 - maxpool_k_stride1(seed_mask)).

    padmask_ref: (B, H+2p, W+2p) f32 zero-padded Bernoulli seed mask (0/1).
    smask_ref:   (B, H, W)       f32 block mask pre-multiplied by the global
                                 renormalisation scale numel / sum.
    """
    pm = padmask_ref[...]                       # f32, values in {0, 1}

    # Separable stride-1 max pool (zero padding == -inf padding for a 0/1 mask):
    # vertical (sublane axis) pass then horizontal (lane axis) pass,
    # 2*(k-1) maximums instead of k^2-1.  For even k this keeps only output
    # rows/cols [0, H) x [0, W), matching PyTorch's [:-1, :-1] crop.
    vmax = pm[:, 0:H, :]
    for dy in range(1, block_size):
        vmax = jnp.maximum(vmax, pm[:, dy:dy + H, :])
    pooled = vmax[:, :, 0:W]
    for dx in range(1, block_size):
        pooled = jnp.maximum(pooled, vmax[:, :, dx:dx + W])

    block_mask = 1.0 - pooled                   # (B, H, W) f32

    # Global renormalisation, accumulated in f32 (exact for a 0/1 mask).
    total = jnp.sum(block_mask)
    numel = jnp.float32(block_mask.size)
    scale = jnp.where(total > 0.0, numel / jnp.maximum(total, 1.0),
                      jnp.float32(0.0))         # guard: all-dropped -> 0, not NaN
    smask_ref[...] = block_mask * scale


def _apply_mask_kernel(x_ref, smask_ref, out_ref):
    """out = x * scaled_block_mask  (lane-dense streaming multiply).

    x_ref:     (1, c_tile, H*W)  feature tile
    smask_ref: (1, 1,      H*W)  scaled block mask for this batch element
    out_ref:   (1, c_tile, H*W)
    """
    x = x_ref[...].astype(jnp.float32)          # f32 math (v5e has no bf16 VPU)
    m = smask_ref[...]                          # broadcasts over the channel axis
    out_ref[...] = (x * m).astype(out_ref.dtype)


def _pick_c_tile(C, HW, itemsize, budget_bytes=2 << 20):
    """Channel tile so one x block is ~<= budget; with x + out + mask all
    double-buffered this stays well under the scoped-VMEM limit on v5e/v6e/v7x."""
    per_c = HW * itemsize
    fit = max(1, budget_bytes // per_c)
    if fit >= C:
        return C                                # full-C block (== array dim: always legal)
    return max(8, (fit // 8) * 8)               # otherwise keep a multiple of 8 sublanes


def dropblock2d(x, key, drop_prob, block_size, training=True):
    """JAX/Pallas equivalent of DropBlock2D.forward (NCHW)."""
    assert x.ndim == 4, "Expected input with 4 dimensions (bsize, channels, height, width)"
    if (not training) or drop_prob == 0.0:
        return x

    B, C, H, W = x.shape
    HW = H * W
    gamma = drop_prob / (block_size ** 2)

    # Bernoulli(gamma) seed mask, kept in f32 regardless of x.dtype.
    seed = (jax.random.uniform(key, (B, H, W), dtype=jnp.float32) < gamma)
    seed = seed.astype(jnp.float32)
    p = block_size // 2
    padded = jnp.pad(seed, ((0, 0), (p, p), (p, p)))
    Hp, Wp = H + 2 * p, W + 2 * p

    # ---- pass 1: block mask + folded renormalisation scale (C-times smaller
    # than x, single invocation) -------------------------------------------
    mask_kernel = functools.partial(_block_mask_kernel,
                                    block_size=block_size, H=H, W=W)
    scaled_mask = pl.pallas_call(
        mask_kernel,
        out_shape=jax.ShapeDtypeStruct((B, H, W), jnp.float32),
        in_specs=[pl.BlockSpec((B, Hp, Wp), lambda: (0, 0, 0))],
        out_specs=pl.BlockSpec((B, H, W), lambda: (0, 0, 0)),
    )(padded)

    # ---- pass 2: tiled, lane-dense element-wise multiply (hot pass) --------
    # Flatten (H, W) -> H*W in the wrapper so the lane axis is wide and stores
    # are full-width; reshape back outside (layout plumbing only).
    x2 = x.reshape(B, C, HW)
    m2 = scaled_mask.reshape(B, 1, HW)

    c_tile = _pick_c_tile(C, HW, jnp.dtype(x.dtype).itemsize)
    grid = (B, pl.cdiv(C, c_tile))

    out2 = pl.pallas_call(
        _apply_mask_kernel,
        grid=grid,
        in_specs=[
            pl.BlockSpec((1, c_tile, HW), lambda b, c: (b, c, 0)),   # x tile
            pl.BlockSpec((1, 1, HW), lambda b, c: (b, 0, 0)),        # mask: resident across C
        ],
        out_specs=pl.BlockSpec((1, c_tile, HW), lambda b, c: (b, c, 0)),
        out_shape=jax.ShapeDtypeStruct((B, C, HW), x.dtype),
        compiler_params=pltpu.CompilerParams(
            dimension_semantics=("parallel", "parallel")),
    )(x2, m2)

    return out2.reshape(B, C, H, W)


if __name__ == "__main__":
    key = jax.random.PRNGKey(0)
    k_x, k_mask = jax.random.split(key)

    B, C, H, W = 2, 4, 16, 16
    drop_prob = 0.1
    block_size = 3

    x = jax.random.normal(k_x, (B, C, H, W), dtype=jnp.float32)

    out = dropblock2d(x, k_mask, drop_prob, block_size, training=True)
    out = jax.block_until_ready(out)

    # Pure-JAX reference (same key -> identical DropBlock realisation).
    gamma = drop_prob / (block_size ** 2)
    seed = (jax.random.uniform(k_mask, (B, H, W), dtype=jnp.float32) < gamma)
    seed = seed.astype(jnp.float32)
    p = block_size // 2
    pooled = jax.lax.reduce_window(
        seed, -jnp.inf, jax.lax.max,
        (1, block_size, block_size), (1, 1, 1),
        [(0, 0), (p, p), (p, p)])[:, :H, :W]
    bm = 1.0 - pooled
    ref = x * bm[:, None, :, :] * (bm.size / jnp.sum(bm))

    assert out.shape == x.shape and out.dtype == x.dtype
    assert jnp.allclose(out, ref, rtol=1e-5, atol=1e-5), float(jnp.max(jnp.abs(out - ref)))
    print("KERNEL_OK")
</pallas_src>

<mosaic_0001>
module attributes {stable_mosaic.version = 11 : i64} {
  func.func @_block_mask_kernel(%arg0: memref<2x18x18xf32, #tpu.memory_space<vmem>>, %arg1: memref<2x16x16xf32, #tpu.memory_space<vmem>>) attributes {dimension_semantics = [], scalar_prefetch = 0 : i64, scratch_operands = 0 : i64, tpu.core_type = #tpu.core_type<tc>} {
    %c0 = arith.constant 0 : index
    %c0_0 = arith.constant 0 : index
    %c0_1 = arith.constant 0 : index
    %0 = vector.load %arg0[%c0, %c0_0, %c0_1] : memref<2x18x18xf32, #tpu.memory_space<vmem>>, vector<2x18x18xf32>
    %1 = vector.extract_strided_slice %0 {offsets = [0, 0, 0], sizes = [2, 16, 18], strides = [1, 1, 1]} : vector<2x18x18xf32> to vector<2x16x18xf32>
    %2 = vector.extract_strided_slice %0 {offsets = [0, 1, 0], sizes = [2, 16, 18], strides = [1, 1, 1]} : vector<2x18x18xf32> to vector<2x16x18xf32>
    %3 = arith.maximumf %1, %2 : vector<2x16x18xf32>
    %4 = vector.extract_strided_slice %0 {offsets = [0, 2, 0], sizes = [2, 16, 18], strides = [1, 1, 1]} : vector<2x18x18xf32> to vector<2x16x18xf32>
    %5 = arith.maximumf %3, %4 : vector<2x16x18xf32>
    %6 = vector.extract_strided_slice %5 {offsets = [0, 0, 0], sizes = [2, 16, 16], strides = [1, 1, 1]} : vector<2x16x18xf32> to vector<2x16x16xf32>
    %7 = vector.extract_strided_slice %5 {offsets = [0, 0, 1], sizes = [2, 16, 16], strides = [1, 1, 1]} : vector<2x16x18xf32> to vector<2x16x16xf32>
    %8 = arith.maximumf %6, %7 : vector<2x16x16xf32>
    %9 = vector.extract_strided_slice %5 {offsets = [0, 0, 2], sizes = [2, 16, 16], strides = [1, 1, 1]} : vector<2x16x18xf32> to vector<2x16x16xf32>
    %10 = arith.maximumf %8, %9 : vector<2x16x16xf32>
    %cst = arith.constant 1.000000e+00 : f32
    %11 = vector.broadcast %cst : f32 to vector<2x16x16xf32>
    %12 = arith.subf %11, %10 : vector<2x16x16xf32>
    %13 = vector.shape_cast %12 : vector<2x16x16xf32> to vector<1x2x16x16xf32>
    %cst_2 = arith.constant dense<0.000000e+00> : vector<1xf32>
    %14 = vector.multi_reduction <add>, %13, %cst_2 [1, 2, 3] : vector<1x2x16x16xf32> to vector<1xf32>
    %15 = vector.shape_cast %14 : vector<1xf32> to vector<1x1x1x1xf32>
    %16 = vector.extract %15[0, 0, 0, 0] : f32 from vector<1x1x1x1xf32>
    %cst_3 = arith.constant 0.000000e+00 : f32
    %17 = arith.cmpf ogt, %16, %cst_3 : f32
    %cst_4 = arith.constant 1.000000e+00 : f32
    %18 = arith.maximumf %16, %cst_4 : f32
    %cst_5 = arith.constant 5.120000e+02 : f32
    %19 = arith.divf %cst_5, %18 : f32
    %cst_6 = arith.constant 0.000000e+00 : f32
    %20 = arith.select %17, %19, %cst_6 : f32
    %21 = vector.broadcast %20 : f32 to vector<2x16x16xf32>
    %22 = arith.mulf %12, %21 : vector<2x16x16xf32>
    %c0_7 = arith.constant 0 : index
    %c0_8 = arith.constant 0 : index
    %c0_9 = arith.constant 0 : index
    %23 = vector.load %arg1[%c0_7, %c0_8, %c0_9] : memref<2x16x16xf32, #tpu.memory_space<vmem>>, vector<2x16x16xf32>
    tpu.vector_store %arg1[%c0_7, %c0_8, %c0_9], %22 {strides = array<i32>} : memref<2x16x16xf32, #tpu.memory_space<vmem>>, vector<2x16x16xf32>,
    return
  }
}

</mosaic_0001>

<llo_original>
// kernel: tpu_custom_call.1
$region0: #{tpu_custom_call.1}
  #allocation0 [shape = 'u32[]', space=smem, size = 0x4, offset = 0x4, fixed_abs, tag = 'smem constant byte address 0x4 - core index']
  #allocation1 [shape = 'u32[144,128]{1,0:T(1,128)}', space=vmem, size = 0x12000, scoped, tag = 'internal scratch']
  %s0 = inlined_call_operand.vmem [shape: f32[2,18,18], index: 0, kind: input, shape index: {}]
  %s1 = inlined_call_operand.hbm [shape: f32[2,16,16], index: 1, kind: output, shape index: {}]
  %s2 = sld [smem:[#allocation0]]
  $region14: #{tpu_custom_call.1} parent=0
    _
  %s4 = ssub.s32 1, %s2
  %s5 = scalar_select 0, %s4, %s2
  $region1: #{tpu_custom_call.1} parent=0
    #allocation2 [shape = 'u8[16384]{0}', space=vmem, size = 0x4000, scoped, tag = 'output window, operand 0, single buffered']
    #allocation3 [shape = 's32[1]{0}', space=sflag, size = 0x4, scoped, tag = 'scoped memory for tpu_custom_call.1']
    %6 = vsyncpa [#allocation3], 0
    // Predicated region
    $region2: #{tpu_custom_call.1} parent=1 // pred_check
      _
    $region3: #{tpu_custom_call.1} parent=1 // pred_check_branch
      %8 = sbr.rel (0) target = $region5
    $region4: #{tpu_custom_call.1} parent=1 // pred_region
      _
    $region5: #{tpu_custom_call.1} parent=1 // pred_fallthru
      _
    %v9 = vld [vmem:[%s0] sm:$0xff]
    %v10 = vld [vmem:[%s0 + $0x8] sm:$0xff]
    %v11 = vld [vmem:[%s0 + $0x10] sm:$0x3]
    %v12 = vld [vmem:[%s0 + $0x18] sm:$0xff]
    %v13 = vld [vmem:[%s0 + $0x20] sm:$0xff]
    %v14 = vld [vmem:[%s0 + $0x28] sm:$0x3]
    %vm21 = vcmask 1046528
    %v22 = vrot.slane %v9, 1
    %v23 = vrot.slane %v10, 1
    %v24 = vsel %vm21, %v22, %v23
    %v25 = vrot.slane %v11, 1
    %v26 = vsel %vm21, %v23, %v25
    %v27 = vrot.slane %v12, 1
    %v28 = vrot.slane %v13, 1
    %v29 = vsel %vm21, %v27, %v28
    %v30 = vrot.slane %v14, 1
    %v31 = vsel %vm21, %v28, %v30
    %v36 = vmax.f32 %v9, %v24
    %v37 = vmax.f32 %v10, %v26
    %v38 = vmax.f32 %v12, %v29
    %v39 = vmax.f32 %v13, %v31
    %vm40 = vcmask 1045504
    %v41 = vrot.slane %v9, 2
    %v42 = vrot.slane %v10, 2
    %v43 = vsel %vm40, %v41, %v42
    %v44 = vrot.slane %v11, 2
    %v45 = vsel %vm40, %v42, %v44
    %v46 = vrot.slane %v12, 2
    %v47 = vrot.slane %v13, 2
    %v48 = vsel %vm40, %v46, %v47
    %v49 = vrot.slane %v14, 2
    %v50 = vsel %vm40, %v47, %v49
    %v55 = vmax.f32 %v36, %v43
    %v56 = vmax.f32 %v37, %v45
    %v57 = vmax.f32 %v38, %v48
    %v58 = vmax.f32 %v39, %v50
    %63 = vrot.lane.b32.xlu0 %v55, 127
    %v64 = vpop.permute.xlu0 %63
    %65 = vrot.lane.b32.xlu0 %v56, 127
    %v66 = vpop.permute.xlu0 %65
    %67 = vrot.lane.b32.xlu0 %v57, 127
    %v68 = vpop.permute.xlu0 %67
    %69 = vrot.lane.b32.xlu0 %v58, 127
    %v70 = vpop.permute.xlu0 %69
    %v75 = vmax.f32 %v55, %v64
    %v76 = vmax.f32 %v56, %v66
    %v77 = vmax.f32 %v57, %v68
    %v78 = vmax.f32 %v58, %v70
    %79 = vrot.lane.b32.xlu0 %v55, 126
    %v80 = vpop.permute.xlu0 %79
    %81 = vrot.lane.b32.xlu0 %v56, 126
    %v82 = vpop.permute.xlu0 %81
    %83 = vrot.lane.b32.xlu0 %v57, 126
    %v84 = vpop.permute.xlu0 %83
    %85 = vrot.lane.b32.xlu0 %v58, 126
    %v86 = vpop.permute.xlu0 %85
    %v91 = vmax.f32 %v75, %v80
    %v92 = vmax.f32 %v76, %v82
    %v93 = vmax.f32 %v77, %v84
    %v94 = vmax.f32 %v78, %v86
    %v95 = vsub.f32 1.0, %v91
    %v96 = vsub.f32 1.0, %v92
    %v97 = vsub.f32 1.0, %v93
    %v98 = vsub.f32 1.0, %v94
    %vm99 = vcmask 130048
    %v100 = vsel %vm99, %v95, 0.0
    %v101 = vsel %vm99, %v96, 0.0
    %v102 = vadd.f32 %v100, %v101
    %v103 = vsel %vm99, %v97, 0.0
    %v104 = vadd.f32 %v102, %v103
    %v105 = vsel %vm99, %v98, 0.0
    %v106 = vadd.f32 %v104, %v105
    %107 = vadd.xlane.f32.xlu0 %v106
    %v108 = vpop.xlane.xlu0 %107
    %v109 = vrot.slane %v108, 4
    %v110 = vadd.f32 %v108, %v109
    %v111 = vrot.slane %v110, 2
    %v112 = vadd.f32 %v110, %v111
    %v113 = vrot.slane %v112, 1
    %v114 = vadd.f32 %v112, %v113
    %s115 = vtos %v114
    %p116 = scmp.gt.f32.partialorder %s115, 0.0
    %s117 = smax.f32 %s115, 1.0
    %v118 = vstv %s117
    %v119 = vrcp.pop %v118
    %s120 = vtos %v119
    %s121 = smul.f32 512.0, %s120
    %s122 = scalar_select %p116, %s121, 0.0
    %v123 = vstv %s122
    %v124 = vmul.f32 %v95, %v123
    %v125 = vmul.f32 %v96, %v123
    %v126 = vmul.f32 %v97, %v123
    %v127 = vmul.f32 %v98, %v123
    %128 = vst.msk [vmem:[#allocation2] sm:$0xff] %vm99, %v124
    %129 = vst.msk [vmem:[#allocation2 + $0x8] sm:$0xff] %vm99, %v125
    %130 = vst.msk [vmem:[#allocation2 + $0x10] sm:$0xff] %vm99, %v126
    %131 = vst.msk [vmem:[#allocation2 + $0x18] sm:$0xff] %vm99, %v127
    // Predicated region
    $region6: #{tpu_custom_call.1} parent=1 // pred_check
      _
    $region7: #{tpu_custom_call.1} parent=1 // pred_check_branch
      %133 = sbr.rel (0) target = $region9
    $region8: #{tpu_custom_call.1} parent=1 // pred_region
      %s135 = ssub.s32 512, 512
      %136 = vsyncadd [#allocation3], %s135
      %s137 = sshll.u32 [#allocation2], 4
      %s138 = int_to_ptr.vmem [resolvable:$true] %s137
      %143 = dma.vmem_to_hbm [thread:$0]  %s138, 512, %s1, [#allocation3], 128, 128, 8
    $region9: #{tpu_custom_call.1} parent=1 // pred_fallthru
      _
    // Predicated region
    $region10: #{tpu_custom_call.1} parent=1 // pred_check
      _
    $region11: #{tpu_custom_call.1} parent=1 // pred_check_branch
      %145 = sbr.rel (0) target = $region13
    $region12: #{tpu_custom_call.1} parent=1 // pred_region
      %146 = dma.done [#allocation3], 512
    $region13: #{tpu_custom_call.1} parent=1 // pred_fallthru
      _
    %147 = vsyncpa [#allocation3], 1

</llo_original>
